<compile_context>
chip_gen: v7x
topology: tpu7x:2x2x1
jax: 0.10.0
libtpu: 0.0.40
codegen_flags: <defaults>
</compile_context>

<pallas_src>
import jax
import jax.numpy as jnp
from jax.experimental import pallas as pl
from jax.experimental.pallas import tpu as pltpu

HID = 64  # hidden_dim


def _gcn_kernel(mbd_ref, x_ref,
                w1_ref, b1_ref,
                w2_ref, b2_ref,
                w3_ref, b3_ref,
                out_ref):
    f32 = jnp.float32
    m = mbd_ref[...]          # [N, N]  block-diagonal propagation, N = B*V
    h = x_ref[...]            # [N, H]  batch-stacked node features

    def layer(h, w_ref, b_ref):
        # Propagation: one dense MXU matmul (off-diagonal blocks are zero).
        hx = jnp.dot(m, h, preferred_element_type=f32)
        # Linear + ReLU: one batch-stacked MXU matmul with M = N = 128.
        z = jnp.dot(hx, w_ref[...], preferred_element_type=f32) + b_ref[...]
        return jnp.maximum(z, 0.0)

    h = layer(h, w1_ref, b1_ref)
    h = layer(h, w2_ref, b2_ref)
    h = layer(h, w3_ref, b3_ref)
    out_ref[...] = h


@jax.jit
def gcn_forward(mvv, x, params):
    B, V, _ = mvv.shape
    H = x.shape[-1]
    N = B * V

    # Build the block-diagonal propagation matrix once, outside the kernel
    # (pure element-wise scaling by eye(B); exact, no approximation).
    eye_b = jnp.eye(B, dtype=mvv.dtype)
    mbd = jnp.einsum('bc,bvw->bvcw', eye_b, mvv).reshape(N, N)   # [N, N]
    x_flat = x.reshape(N, H)                                     # [N, H]

    full = lambda shape: pl.BlockSpec(shape, lambda i: (0,) * len(shape))
    grid_spec = pltpu.PrefetchScalarGridSpec(
        num_scalar_prefetch=0,
        grid=(1,),                       # single step — whole problem in VMEM
        in_specs=[
            full((N, N)),                 # block-diagonal Mvv
            full((N, H)),                 # x (batch-stacked)
            full((H, H)), full((1, H)),   # gcn_v1.linear
            full((H, H)), full((1, H)),   # gcn_v2.linear
            full((H, H)), full((1, H)),   # gcn_v3.linear
        ],
        out_specs=full((N, H)),
    )
    out_flat = pl.pallas_call(
        _gcn_kernel,
        out_shape=jax.ShapeDtypeStruct((N, H), jnp.float32),
        grid_spec=grid_spec,
        compiler_params=pltpu.CompilerParams(
            dimension_semantics=("arbitrary",)),
    )(mbd, x_flat,
      params["w1"], params["b1"],
      params["w2"], params["b2"],
      params["w3"], params["b3"])
    return out_flat.reshape(B, V, H)


def init_params(key):
    """Deterministic nn.Linear-style init (uniform(-1/sqrt(in), 1/sqrt(in)))."""
    def lin(k, fin, fout):
        kw, kb = jax.random.split(k)
        bound = 1.0 / jnp.sqrt(jnp.float32(fin))
        w = jax.random.uniform(kw, (fin, fout), jnp.float32, -bound, bound)
        b = jax.random.uniform(kb, (1, fout), jnp.float32, -bound, bound)
        return w, b
    ks = jax.random.split(key, 3)
    w1, b1 = lin(ks[0], HID, HID)
    w2, b2 = lin(ks[1], HID, HID)
    w3, b3 = lin(ks[2], HID, HID)
    return dict(w1=w1, b1=b1, w2=w2, b2=b2, w3=w3, b3=b3)


def ref_forward(mvv, x, p):
    """Pure-JAX reference of GCN: three relu(Linear(Mvv @ x)) layers."""
    h = x
    for i in (1, 2, 3):
        h = jax.nn.relu(mvv @ h @ p[f"w{i}"] + p[f"b{i}"])
    return h


if __name__ == "__main__":
    B, V = 8, 16              # batch, num nodes (small shapes)

    key = jax.random.PRNGKey(0)
    k_a, k_x, k_p = jax.random.split(key, 3)

    # Realistic propagation matrix Mvv = D^-1/2 A D^-1/2 (host-side,
    # element-wise scaling — no diag-embed matmuls).
    a_rand = (jax.random.uniform(k_a, (B, V, V)) > 0.6).astype(jnp.float32)
    a = jnp.maximum(a_rand, jnp.transpose(a_rand, (0, 2, 1)))
    a = jnp.maximum(a, jnp.eye(V, dtype=jnp.float32)[None])      # self-loops
    deg = jnp.sum(a, axis=1)                                     # [B, V]
    dinv = jnp.where(deg > 0, deg ** -0.5, 0.0)
    mvv = dinv[:, :, None] * a * dinv[:, None, :]                # [B, V, V]

    x = jax.random.normal(k_x, (B, V, HID), jnp.float32)
    params = init_params(k_p)

    out = gcn_forward(mvv, x, params)
    out = jax.block_until_ready(out)

    ref = ref_forward(mvv, x, params)
    assert out.shape == (B, V, HID)
    assert jnp.allclose(out, ref, rtol=1e-3, atol=1e-3), float(
        jnp.max(jnp.abs(out - ref)))

    print("KERNEL_OK")
</pallas_src>

<mosaic_0001>
module attributes {stable_mosaic.version = 11 : i64} {
  func.func @_gcn_kernel(%arg0: i32, %arg1: memref<128x128xf32, #tpu.memory_space<vmem>>, %arg2: memref<128x64xf32, #tpu.memory_space<vmem>>, %arg3: memref<64x64xf32, #tpu.memory_space<vmem>>, %arg4: memref<1x64xf32, #tpu.memory_space<vmem>>, %arg5: memref<64x64xf32, #tpu.memory_space<vmem>>, %arg6: memref<1x64xf32, #tpu.memory_space<vmem>>, %arg7: memref<64x64xf32, #tpu.memory_space<vmem>>, %arg8: memref<1x64xf32, #tpu.memory_space<vmem>>, %arg9: memref<128x64xf32, #tpu.memory_space<vmem>>) attributes {dimension_semantics = [#tpu.dimension_semantics<arbitrary>], iteration_bounds = array<i64: 1>, scalar_prefetch = 0 : i64, scratch_operands = 0 : i64, tpu.core_type = #tpu.core_type<tc>, window_params = [{pipeline_mode = #tpu.pipeline_mode<synchronous>, transform_indices = @transform_0, window_bounds = array<i64: 128, 128>}, {pipeline_mode = #tpu.pipeline_mode<synchronous>, transform_indices = @transform_1, window_bounds = array<i64: 128, 64>}, {pipeline_mode = #tpu.pipeline_mode<synchronous>, transform_indices = @transform_2, window_bounds = array<i64: 64, 64>}, {pipeline_mode = #tpu.pipeline_mode<synchronous>, transform_indices = @transform_3, window_bounds = array<i64: 1, 64>}, {pipeline_mode = #tpu.pipeline_mode<synchronous>, transform_indices = @transform_4, window_bounds = array<i64: 64, 64>}, {pipeline_mode = #tpu.pipeline_mode<synchronous>, transform_indices = @transform_5, window_bounds = array<i64: 1, 64>}, {pipeline_mode = #tpu.pipeline_mode<synchronous>, transform_indices = @transform_6, window_bounds = array<i64: 64, 64>}, {pipeline_mode = #tpu.pipeline_mode<synchronous>, transform_indices = @transform_7, window_bounds = array<i64: 1, 64>}, {pipeline_mode = #tpu.pipeline_mode<synchronous>, transform_indices = @transform_8, window_bounds = array<i64: 128, 64>}]} {
    %c0 = arith.constant 0 : index
    %c0_0 = arith.constant 0 : index
    %0 = vector.load %arg1[%c0, %c0_0] : memref<128x128xf32, #tpu.memory_space<vmem>>, vector<128x128xf32>
    %c0_1 = arith.constant 0 : index
    %c0_2 = arith.constant 0 : index
    %1 = vector.load %arg2[%c0_1, %c0_2] : memref<128x64xf32, #tpu.memory_space<vmem>>, vector<128x64xf32>
    %cst = arith.constant dense<0.000000e+00> : vector<128x64xf32>
    %2 = tpu.matmul %0, %1, %cst {dimension_numbers = #tpu.dot_dimension_numbers<[1], [0], [0], [1], [0, 0, 1, 1], [], []>} : vector<128x128xf32>, vector<128x64xf32>, vector<128x64xf32> -> vector<128x64xf32>
    %c0_3 = arith.constant 0 : index
    %c0_4 = arith.constant 0 : index
    %3 = vector.load %arg3[%c0_3, %c0_4] : memref<64x64xf32, #tpu.memory_space<vmem>>, vector<64x64xf32>
    %cst_5 = arith.constant dense<0.000000e+00> : vector<128x64xf32>
    %4 = tpu.matmul %2, %3, %cst_5 {dimension_numbers = #tpu.dot_dimension_numbers<[1], [0], [0], [1], [0, 0, 1, 1], [], []>} : vector<128x64xf32>, vector<64x64xf32>, vector<128x64xf32> -> vector<128x64xf32>
    %c0_6 = arith.constant 0 : index
    %c0_7 = arith.constant 0 : index
    %5 = vector.load %arg4[%c0_6, %c0_7] : memref<1x64xf32, #tpu.memory_space<vmem>>, vector<1x64xf32>
    %6 = vector.broadcast %5 : vector<1x64xf32> to vector<128x64xf32>
    %7 = arith.addf %4, %6 : vector<128x64xf32>
    %cst_8 = arith.constant 0.000000e+00 : f32
    %8 = vector.broadcast %cst_8 : f32 to vector<128x64xf32>
    %9 = arith.maximumf %7, %8 : vector<128x64xf32>
    %cst_9 = arith.constant dense<0.000000e+00> : vector<128x64xf32>
    %10 = tpu.matmul %0, %9, %cst_9 {dimension_numbers = #tpu.dot_dimension_numbers<[1], [0], [0], [1], [0, 0, 1, 1], [], []>} : vector<128x128xf32>, vector<128x64xf32>, vector<128x64xf32> -> vector<128x64xf32>
    %c0_10 = arith.constant 0 : index
    %c0_11 = arith.constant 0 : index
    %11 = vector.load %arg5[%c0_10, %c0_11] : memref<64x64xf32, #tpu.memory_space<vmem>>, vector<64x64xf32>
    %cst_12 = arith.constant dense<0.000000e+00> : vector<128x64xf32>
    %12 = tpu.matmul %10, %11, %cst_12 {dimension_numbers = #tpu.dot_dimension_numbers<[1], [0], [0], [1], [0, 0, 1, 1], [], []>} : vector<128x64xf32>, vector<64x64xf32>, vector<128x64xf32> -> vector<128x64xf32>
    %c0_13 = arith.constant 0 : index
    %c0_14 = arith.constant 0 : index
    %13 = vector.load %arg6[%c0_13, %c0_14] : memref<1x64xf32, #tpu.memory_space<vmem>>, vector<1x64xf32>
    %14 = vector.broadcast %13 : vector<1x64xf32> to vector<128x64xf32>
    %15 = arith.addf %12, %14 : vector<128x64xf32>
    %cst_15 = arith.constant 0.000000e+00 : f32
    %16 = vector.broadcast %cst_15 : f32 to vector<128x64xf32>
    %17 = arith.maximumf %15, %16 : vector<128x64xf32>
    %cst_16 = arith.constant dense<0.000000e+00> : vector<128x64xf32>
    %18 = tpu.matmul %0, %17, %cst_16 {dimension_numbers = #tpu.dot_dimension_numbers<[1], [0], [0], [1], [0, 0, 1, 1], [], []>} : vector<128x128xf32>, vector<128x64xf32>, vector<128x64xf32> -> vector<128x64xf32>
    %c0_17 = arith.constant 0 : index
    %c0_18 = arith.constant 0 : index
    %19 = vector.load %arg7[%c0_17, %c0_18] : memref<64x64xf32, #tpu.memory_space<vmem>>, vector<64x64xf32>
    %cst_19 = arith.constant dense<0.000000e+00> : vector<128x64xf32>
    %20 = tpu.matmul %18, %19, %cst_19 {dimension_numbers = #tpu.dot_dimension_numbers<[1], [0], [0], [1], [0, 0, 1, 1], [], []>} : vector<128x64xf32>, vector<64x64xf32>, vector<128x64xf32> -> vector<128x64xf32>
    %c0_20 = arith.constant 0 : index
    %c0_21 = arith.constant 0 : index
    %21 = vector.load %arg8[%c0_20, %c0_21] : memref<1x64xf32, #tpu.memory_space<vmem>>, vector<1x64xf32>
    %22 = vector.broadcast %21 : vector<1x64xf32> to vector<128x64xf32>
    %23 = arith.addf %20, %22 : vector<128x64xf32>
    %cst_22 = arith.constant 0.000000e+00 : f32
    %24 = vector.broadcast %cst_22 : f32 to vector<128x64xf32>
    %25 = arith.maximumf %23, %24 : vector<128x64xf32>
    %c0_23 = arith.constant 0 : index
    %c0_24 = arith.constant 0 : index
    %26 = vector.load %arg9[%c0_23, %c0_24] : memref<128x64xf32, #tpu.memory_space<vmem>>, vector<128x64xf32>
    tpu.vector_store %arg9[%c0_23, %c0_24], %25 {strides = array<i32>} : memref<128x64xf32, #tpu.memory_space<vmem>>, vector<128x64xf32>,
    return
  }
  func.func @transform_0(%arg0: i32) -> (i32, i32) {
    %c0_i32 = arith.constant 0 : i32
    %c0_i32_0 = arith.constant 0 : i32
    %c0_i32_1 = arith.constant 0 : i32
    return %c0_i32, %c0_i32_0 : i32, i32
  }
  func.func @transform_1(%arg0: i32) -> (i32, i32) {
    %c0_i32 = arith.constant 0 : i32
    %c0_i32_0 = arith.constant 0 : i32
    %c0_i32_1 = arith.constant 0 : i32
    return %c0_i32, %c0_i32_0 : i32, i32
  }
  func.func @transform_2(%arg0: i32) -> (i32, i32) {
    %c0_i32 = arith.constant 0 : i32
    %c0_i32_0 = arith.constant 0 : i32
    %c0_i32_1 = arith.constant 0 : i32
    return %c0_i32, %c0_i32_0 : i32, i32
  }
  func.func @transform_3(%arg0: i32) -> (i32, i32) {
    %c0_i32 = arith.constant 0 : i32
    %c0_i32_0 = arith.constant 0 : i32
    %c0_i32_1 = arith.constant 0 : i32
    return %c0_i32, %c0_i32_0 : i32, i32
  }
  func.func @transform_4(%arg0: i32) -> (i32, i32) {
    %c0_i32 = arith.constant 0 : i32
    %c0_i32_0 = arith.constant 0 : i32
    %c0_i32_1 = arith.constant 0 : i32
    return %c0_i32, %c0_i32_0 : i32, i32
  }
  func.func @transform_5(%arg0: i32) -> (i32, i32) {
    %c0_i32 = arith.constant 0 : i32
    %c0_i32_0 = arith.constant 0 : i32
    %c0_i32_1 = arith.constant 0 : i32
    return %c0_i32, %c0_i32_0 : i32, i32
  }
  func.func @transform_6(%arg0: i32) -> (i32, i32) {
    %c0_i32 = arith.constant 0 : i32
    %c0_i32_0 = arith.constant 0 : i32
    %c0_i32_1 = arith.constant 0 : i32
    return %c0_i32, %c0_i32_0 : i32, i32
  }
  func.func @transform_7(%arg0: i32) -> (i32, i32) {
    %c0_i32 = arith.constant 0 : i32
    %c0_i32_0 = arith.constant 0 : i32
    %c0_i32_1 = arith.constant 0 : i32
    return %c0_i32, %c0_i32_0 : i32, i32
  }
  func.func @transform_8(%arg0: i32) -> (i32, i32) {
    %c0_i32 = arith.constant 0 : i32
    %c0_i32_0 = arith.constant 0 : i32
    %c0_i32_1 = arith.constant 0 : i32
    return %c0_i32, %c0_i32_0 : i32, i32
  }
}

</mosaic_0001>

<llo_original>
// kernel: gcn_forward.1
$region0: #{gcn_forward.1}
  #allocation0 [shape = 'u32[]', space=smem, size = 0x4, offset = 0x4, fixed_abs, tag = 'smem constant byte address 0x4 - core index']
  #allocation1 [shape = 'u32[144,128]{1,0:T(1,128)}', space=vmem, size = 0x12000, scoped, tag = 'internal scratch']
  %s0 = inlined_call_operand.vmem [shape: f32[128,128], index: 0, kind: input, shape index: {}]
  %s1 = inlined_call_operand.vmem [shape: f32[128,64], index: 1, kind: input, shape index: {}]
  %s2 = inlined_call_operand.vmem [shape: f32[64,64], index: 2, kind: input, shape index: {}]
  %s3 = inlined_call_operand.vmem [shape: f32[1,64], index: 3, kind: input, shape index: {}]
  %s4 = inlined_call_operand.vmem [shape: f32[64,64], index: 4, kind: input, shape index: {}]
  %s5 = inlined_call_operand.vmem [shape: f32[1,64], index: 5, kind: input, shape index: {}]
  %s6 = inlined_call_operand.vmem [shape: f32[64,64], index: 6, kind: input, shape index: {}]
  %s7 = inlined_call_operand.vmem [shape: f32[1,64], index: 7, kind: input, shape index: {}]
  %s8 = inlined_call_operand.hbm [shape: f32[128,64], index: 8, kind: output, shape index: {}]
  %s9 = sld [smem:[#allocation0]]
  $region42: #{gcn_forward.1} parent=0
    _
  %s11 = ssub.s32 1, %s9
  %s12 = scalar_select 0, %s11, %s9
  $region1: #{gcn_forward.1} parent=0
    #allocation2 [shape = 'u8[65536]{0}', space=vmem, size = 0x10000, scoped, tag = 'output window, operand 0, single buffered']
    #allocation3 [shape = 's32[1]{0}', space=sflag, size = 0x4, scoped, tag = 'scoped memory for gcn_forward.1']
    %13 = vsyncpa [#allocation3], 0
    // Predicated region
    $region2: #{gcn_forward.1} parent=1 // pred_check
      _
    $region3: #{gcn_forward.1} parent=1 // pred_check_branch
      %15 = sbr.rel (0) target = $region5
    $region4: #{gcn_forward.1} parent=1 // pred_region
      _
    $region5: #{gcn_forward.1} parent=1 // pred_fallthru
      _
    // Predicated region
    $region6: #{gcn_forward.1} parent=1 // pred_check
      _
    $region7: #{gcn_forward.1} parent=1 // pred_check_branch
      %17 = sbr.rel (0) target = $region9
    $region8: #{gcn_forward.1} parent=1 // pred_region
      _
    $region9: #{gcn_forward.1} parent=1 // pred_fallthru
      _
    // Predicated region
    $region10: #{gcn_forward.1} parent=1 // pred_check
      _
    $region11: #{gcn_forward.1} parent=1 // pred_check_branch
      %19 = sbr.rel (0) target = $region13
    $region12: #{gcn_forward.1} parent=1 // pred_region
      _
    $region13: #{gcn_forward.1} parent=1 // pred_fallthru
      _
    // Predicated region
    $region14: #{gcn_forward.1} parent=1 // pred_check
      _
    $region15: #{gcn_forward.1} parent=1 // pred_check_branch
      %21 = sbr.rel (0) target = $region17
    $region16: #{gcn_forward.1} parent=1 // pred_region
      _
    $region17: #{gcn_forward.1} parent=1 // pred_fallthru
      _
    // Predicated region
    $region18: #{gcn_forward.1} parent=1 // pred_check
      _
    $region19: #{gcn_forward.1} parent=1 // pred_check_branch
      %23 = sbr.rel (0) target = $region21
    $region20: #{gcn_forward.1} parent=1 // pred_region
      _
    $region21: #{gcn_forward.1} parent=1 // pred_fallthru
      _
    // Predicated region
    $region22: #{gcn_forward.1} parent=1 // pred_check
      _
    $region23: #{gcn_forward.1} parent=1 // pred_check_branch
      %25 = sbr.rel (0) target = $region25
    $region24: #{gcn_forward.1} parent=1 // pred_region
      _
    $region25: #{gcn_forward.1} parent=1 // pred_fallthru
      _
    // Predicated region
    $region26: #{gcn_forward.1} parent=1 // pred_check
      _
    $region27: #{gcn_forward.1} parent=1 // pred_check_branch
      %27 = sbr.rel (0) target = $region29
    $region28: #{gcn_forward.1} parent=1 // pred_region
      _
    $region29: #{gcn_forward.1} parent=1 // pred_fallthru
      _
    // Predicated region
    $region30: #{gcn_forward.1} parent=1 // pred_check
      _
    $region31: #{gcn_forward.1} parent=1 // pred_check_branch
      %29 = sbr.rel (0) target = $region33
    $region32: #{gcn_forward.1} parent=1 // pred_region
      _
    $region33: #{gcn_forward.1} parent=1 // pred_fallthru
      _
    %v30 = vld [vmem:[%s0] sm:$0xff]
    %v31 = vld [vmem:[%s0 + $0x8] sm:$0xff]
    %v32 = vld [vmem:[%s0 + $0x10] sm:$0xff]
    %v33 = vld [vmem:[%s0 + $0x18] sm:$0xff]
    %v34 = vld [vmem:[%s0 + $0x20] sm:$0xff]
    %v35 = vld [vmem:[%s0 + $0x28] sm:$0xff]
    %v36 = vld [vmem:[%s0 + $0x30] sm:$0xff]
    %v37 = vld [vmem:[%s0 + $0x38] sm:$0xff]
    %v38 = vld [vmem:[%s0 + $0x40] sm:$0xff]
    %v39 = vld [vmem:[%s0 + $0x48] sm:$0xff]
    %v40 = vld [vmem:[%s0 + $0x50] sm:$0xff]
    %v41 = vld [vmem:[%s0 + $0x58] sm:$0xff]
    %v42 = vld [vmem:[%s0 + $0x60] sm:$0xff]
    %v43 = vld [vmem:[%s0 + $0x68] sm:$0xff]
    %v44 = vld [vmem:[%s0 + $0x70] sm:$0xff]
    %v45 = vld [vmem:[%s0 + $0x78] sm:$0xff]
    %v46 = vld [vmem:[%s1] sm:$0xff]
    %v47 = vld [vmem:[%s1 + $0x8] sm:$0xff]
    %v48 = vld [vmem:[%s1 + $0x10] sm:$0xff]
    %v49 = vld [vmem:[%s1 + $0x18] sm:$0xff]
    %v50 = vld [vmem:[%s1 + $0x20] sm:$0xff]
    %v51 = vld [vmem:[%s1 + $0x28] sm:$0xff]
    %v52 = vld [vmem:[%s1 + $0x30] sm:$0xff]
    %v53 = vld [vmem:[%s1 + $0x38] sm:$0xff]
    %v54 = vld [vmem:[%s1 + $0x40] sm:$0xff]
    %v55 = vld [vmem:[%s1 + $0x48] sm:$0xff]
    %v56 = vld [vmem:[%s1 + $0x50] sm:$0xff]
    %v57 = vld [vmem:[%s1 + $0x58] sm:$0xff]
    %v58 = vld [vmem:[%s1 + $0x60] sm:$0xff]
    %v59 = vld [vmem:[%s1 + $0x68] sm:$0xff]
    %v60 = vld [vmem:[%s1 + $0x70] sm:$0xff]
    %v61 = vld [vmem:[%s1 + $0x78] sm:$0xff]
    %62 = vmatprep.subr.mxu0 0.0
    %63 = vmatpush1.msra.mxu0 %v46
    %64 = vmatprep.subr.mxu0 0.0
    %65 = vmatpush1.msra.mxu0 %v47
    %66 = vmatprep.subr.mxu0 0.0
    %67 = vmatpush1.msra.mxu0 %v48
    %68 = vmatprep.subr.mxu0 0.0
    %69 = vmatpush1.msra.mxu0 %v49
    %70 = vmatprep.subr.mxu0 0.0
    %71 = vmatpush1.msra.mxu0 %v50
    %72 = vmatprep.subr.mxu0 0.0
    %73 = vmatpush1.msra.mxu0 %v51
    %74 = vmatprep.subr.mxu0 0.0
    %75 = vmatpush1.msra.mxu0 %v52
    %76 = vmatprep.subr.mxu0 0.0
    %77 = vmatpush1.msra.mxu0 %v53
    %78 = vmatprep.subr.mxu0 0.0
    %79 = vmatpush1.msra.mxu0 %v54
    %80 = vmatprep.subr.mxu0 0.0
    %81 = vmatpush1.msra.mxu0 %v55
    %82 = vmatprep.subr.mxu0 0.0
    %83 = vmatpush1.msra.mxu0 %v56
    %84 = vmatprep.subr.mxu0 0.0
    %85 = vmatpush1.msra.mxu0 %v57
    %86 = vmatprep.subr.mxu0 0.0
    %87 = vmatpush1.msra.mxu0 %v58
    %88 = vmatprep.subr.mxu0 0.0
    %89 = vmatpush1.msra.mxu0 %v59
    %90 = vmatprep.subr.mxu0 0.0
    %91 = vmatpush1.msra.mxu0 %v60
    %92 = vmatprep.subr.mxu0 0.0
    %93 = vmatpush1.msra.mxu0 %v61
    %94 = vmatprep.subr.mxu0 0.0
    %95 = vmatpush1.msra.mxu0 0.0
    %96 = vmatprep.subr.mxu0 0.0
    %97 = vmatpush1.msra.mxu0 0.0
    %98 = vmatprep.subr.mxu0 0.0
    %99 = vmatpush1.msra.mxu0 0.0
    %100 = vmatprep.subr.mxu0 0.0
    %101 = vmatpush1.msra.mxu0 0.0
    %102 = vmatprep.subr.mxu0 0.0
    %103 = vmatpush1.msra.mxu0 0.0
    %104 = vmatprep.subr.mxu0 0.0
    %105 = vmatpush1.msra.mxu0 0.0
    %106 = vmatprep.subr.mxu0 0.0
    %107 = vmatpush1.msra.mxu0 0.0
    %108 = vmatprep.subr.mxu0 0.0
    %109 = vmatpush1.msra.mxu0 0.0
    %110 = vmatprep.subr.mxu0 0.0
    %111 = vmatpush1.msra.mxu0 0.0
    %112 = vmatprep.subr.mxu0 0.0
    %113 = vmatpush1.msra.mxu0 0.0
    %114 = vmatprep.subr.mxu0 0.0
    %115 = vmatpush1.msra.mxu0 0.0
    %116 = vmatprep.subr.mxu0 0.0
    %117 = vmatpush1.msra.mxu0 0.0
    %118 = vmatprep.subr.mxu0 0.0
    %119 = vmatpush1.msra.mxu0 0.0
    %120 = vmatprep.subr.mxu0 0.0
    %121 = vmatpush1.msra.mxu0 0.0
    %122 = vmatprep.subr.mxu0 0.0
    %123 = vmatpush1.msra.mxu0 0.0
    %124 = vmatprep.subr.mxu0 0.0
    %125 = vmatpush1.msra.mxu0 0.0
    %126 = vmatprep.mubr.f32.mxu0 0.0
    %127 = vmatmul.mubr.f32.gmra.mrb[0].mxu0 %v30
    %v128 = vpop.f32.mrb[0].mxu0
    %v129 = vadd.f32 0.0, %v128
    %v130 = vpop.f32.mrb[0].mxu0
    %131 = vmatprep.mubr.f32.mxu0 0.0
    %132 = vmatmul.mubr.f32.gmra.mrb[0].mxu0 %v31
    %v133 = vpop.f32.mrb[0].mxu0
    %v134 = vadd.f32 0.0, %v133
    %v135 = vpop.f32.mrb[0].mxu0
    %136 = vmatprep.mubr.f32.mxu0 0.0
    %137 = vmatmul.mubr.f32.gmra.mrb[0].mxu0 %v32
    %v138 = vpop.f32.mrb[0].mxu0
    %v139 = vadd.f32 0.0, %v138
    %v140 = vpop.f32.mrb[0].mxu0
    %141 = vmatprep.mubr.f32.mxu0 0.0
    %142 = vmatmul.mubr.f32.gmra.mrb[0].mxu0 %v33
    %v143 = vpop.f32.mrb[0].mxu0
    %v144 = vadd.f32 0.0, %v143
    %v145 = vpop.f32.mrb[0].mxu0
    %146 = vmatprep.mubr.f32.mxu0 0.0
    %147 = vmatmul.mubr.f32.gmra.mrb[0].mxu0 %v34
    %v148 = vpop.f32.mrb[0].mxu0
    %v149 = vadd.f32 0.0, %v148
    %v150 = vpop.f32.mrb[0].mxu0
    %151 = vmatprep.mubr.f32.mxu0 0.0
    %152 = vmatmul.mubr.f32.gmra.mrb[0].mxu0 %v35
    %v153 = vpop.f32.mrb[0].mxu0
    %v154 = vadd.f32 0.0, %v153
    %v155 = vpop.f32.mrb[0].mxu0
    %156 = vmatprep.mubr.f32.mxu0 0.0
    %157 = vmatmul.mubr.f32.gmra.mrb[0].mxu0 %v36
    %v158 = vpop.f32.mrb[0].mxu0
    %v159 = vadd.f32 0.0, %v158
    %v160 = vpop.f32.mrb[0].mxu0
    %161 = vmatprep.mubr.f32.mxu0 0.0
    %162 = vmatmul.mubr.f32.gmra.mrb[0].mxu0 %v37
    %v163 = vpop.f32.mrb[0].mxu0
    %v164 = vadd.f32 0.0, %v163
    %v165 = vpop.f32.mrb[0].mxu0
    %166 = vmatprep.mubr.f32.mxu0 0.0
    %167 = vmatmul.mubr.f32.gmra.mrb[0].mxu0 %v38
    %v168 = vpop.f32.mrb[0].mxu0
    %v169 = vadd.f32 0.0, %v168
    %v170 = vpop.f32.mrb[0].mxu0
    %171 = vmatprep.mubr.f32.mxu0 0.0
    %172 = vmatmul.mubr.f32.gmra.mrb[0].mxu0 %v39
    %v173 = vpop.f32.mrb[0].mxu0
    %v174 = vadd.f32 0.0, %v173
    %v175 = vpop.f32.mrb[0].mxu0
    %176 = vmatprep.mubr.f32.mxu0 0.0
    %177 = vmatmul.mubr.f32.gmra.mrb[0].mxu0 %v40
    %v178 = vpop.f32.mrb[0].mxu0
    %v179 = vadd.f32 0.0, %v178
    %v180 = vpop.f32.mrb[0].mxu0
    %181 = vmatprep.mubr.f32.mxu0 0.0
    %182 = vmatmul.mubr.f32.gmra.mrb[0].mxu0 %v41
    %v183 = vpop.f32.mrb[0].mxu0
    %v184 = vadd.f32 0.0, %v183
    %v185 = vpop.f32.mrb[0].mxu0
    %186 = vmatprep.mubr.f32.mxu0 0.0
    %187 = vmatmul.mubr.f32.gmra.mrb[0].mxu0 %v42
    %v188 = vpop.f32.mrb[0].mxu0
    %v189 = vadd.f32 0.0, %v188
    %v190 = vpop.f32.mrb[0].mxu0
    %191 = vmatprep.mubr.f32.mxu0 0.0
    %192 = vmatmul.mubr.f32.gmra.mrb[0].mxu0 %v43
    %v193 = vpop.f32.mrb[0].mxu0
    %v194 = vadd.f32 0.0, %v193
    %v195 = vpop.f32.mrb[0].mxu0
    %196 = vmatprep.mubr.f32.mxu0 0.0
    %197 = vmatmul.mubr.f32.gmra.mrb[0].mxu0 %v44
    %v198 = vpop.f32.mrb[0].mxu0
    %v199 = vadd.f32 0.0, %v198
    %v200 = vpop.f32.mrb[0].mxu0
    %201 = vmatprep.mubr.f32.mxu0 0.0
    %202 = vmatmul.mubr.f32.gmra.mrb[0].mxu0 %v45
    %v203 = vpop.f32.mrb[0].mxu0
    %v204 = vadd.f32 0.0, %v203
    %v205 = vpop.f32.mrb[0].mxu0
    %206 = vdwg.mxu0
    %v207 = vld [vmem:[%s2] sm:$0xff]
    %v208 = vld [vmem:[%s2 + $0x8] sm:$0xff]
    %v209 = vld [vmem:[%s2 + $0x10] sm:$0xff]
    %v210 = vld [vmem:[%s2 + $0x18] sm:$0xff]
    %v211 = vld [vmem:[%s2 + $0x20] sm:$0xff]
    %v212 = vld [vmem:[%s2 + $0x28] sm:$0xff]
    %v213 = vld [vmem:[%s2 + $0x30] sm:$0xff]
    %v214 = vld [vmem:[%s2 + $0x38] sm:$0xff]
    %v215 = vld [vmem:[%s3] sm:$0x1]
    %v217 = vlaneseq
    %v218 = vshrl.u32 %v217, 7
    %v219 = vsub.s32 0, %v218
    %v220 = vrot.slane %v215, %v219
    %vm222 = vcmask 523264
    %v224 = vsel %vm222, %v129, 0
    %v227 = vsel %vm222, %v134, 0
    %v230 = vsel %vm222, %v139, 0
    %v233 = vsel %vm222, %v144, 0
    %v236 = vsel %vm222, %v149, 0
    %v239 = vsel %vm222, %v154, 0
    %v242 = vsel %vm222, %v159, 0
    %v245 = vsel %vm222, %v164, 0
    %v248 = vsel %vm222, %v169, 0
    %v251 = vsel %vm222, %v174, 0
    %v254 = vsel %vm222, %v179, 0
    %v257 = vsel %vm222, %v184, 0
    %v260 = vsel %vm222, %v189, 0
    %v263 = vsel %vm222, %v194, 0
    %v266 = vsel %vm222, %v199, 0
    %v269 = vsel %vm222, %v204, 0
    %271 = vmatprep.subr.mxu0 0.0
    %272 = vmatpush1.msra.mxu0 %v207
    %273 = vmatprep.subr.mxu0 0.0
    %274 = vmatpush1.msra.mxu0 %v208
    %275 = vmatprep.subr.mxu0 0.0
    %276 = vmatpush1.msra.mxu0 %v209
    %277 = vmatprep.subr.mxu0 0.0
    %278 = vmatpush1.msra.mxu0 %v210
    %279 = vmatprep.subr.mxu0 0.0
    %280 = vmatpush1.msra.mxu0 %v211
    %281 = vmatprep.subr.mxu0 0.0
    %282 = vmatpush1.msra.mxu0 %v212
    %283 = vmatprep.subr.mxu0 0.0
    %284 = vmatpush1.msra.mxu0 %v213
    %285 = vmatprep.subr.mxu0 0.0
    %286 = vmatpush1.msra.mxu0 %v214
    %287 = vmatprep.subr.mxu0 0.0
    %288 = vmatpush1.msra.mxu0 0.0
    %289 = vmatprep.subr.mxu0 0.0
    %290 = vmatpush1.msra.mxu0 0.0
    %291 = vmatprep.subr.mxu0 0.0
    %292 = vmatpush1.msra.mxu0 0.0
    %293 = vmatprep.subr.mxu0 0.0
    %294 = vmatpush1.msra.mxu0 0.0
    %295 = vmatprep.subr.mxu0 0.0
    %296 = vmatpush1.msra.mxu0 0.0
    %297 = vmatprep.subr.mxu0 0.0
    %298 = vmatpush1.msra.mxu0 0.0
    %299 = vmatprep.subr.mxu0 0.0
    %300 = vmatpush1.msra.mxu0 0.0
    %301 = vmatprep.subr.mxu0 0.0
    %302 = vmatpush1.msra.mxu0 0.0
    %303 = vmatprep.subr.mxu0 0.0
    %304 = vmatpush1.msra.mxu0 0.0
    %305 = vmatprep.subr.mxu0 0.0
    %306 = vmatpush1.msra.mxu0 0.0
    %307 = vmatprep.subr.mxu0 0.0
    %308 = vmatpush1.msra.mxu0 0.0
    %309 = vmatprep.subr.mxu0 0.0
    %310 = vmatpush1.msra.mxu0 0.0
    %311 = vmatprep.subr.mxu0 0.0
    %312 = vmatpush1.msra.mxu0 0.0
    %313 = vmatprep.subr.mxu0 0.0
    %314 = vmatpush1.msra.mxu0 0.0
    %315 = vmatprep.subr.mxu0 0.0
    %316 = vmatpush1.msra.mxu0 0.0
    %317 = vmatprep.subr.mxu0 0.0
    %318 = vmatpush1.msra.mxu0 0.0
    %319 = vmatprep.subr.mxu0 0.0
    %320 = vmatpush1.msra.mxu0 0.0
    %321 = vmatprep.subr.mxu0 0.0
    %322 = vmatpush1.msra.mxu0 0.0
    %323 = vmatprep.subr.mxu0 0.0
    %324 = vmatpush1.msra.mxu0 0.0
    %325 = vmatprep.subr.mxu0 0.0
    %326 = vmatpush1.msra.mxu0 0.0
    %327 = vmatprep.subr.mxu0 0.0
    %328 = vmatpush1.msra.mxu0 0.0
    %329 = vmatprep.subr.mxu0 0.0
    %330 = vmatpush1.msra.mxu0 0.0
    %331 = vmatprep.subr.mxu0 0.0
    %332 = vmatpush1.msra.mxu0 0.0
    %333 = vmatprep.subr.mxu0 0.0
    %334 = vmatpush1.msra.mxu0 0.0
    %335 = vmatprep.mubr.f32.mxu0 0.0
    %336 = vmatmul.mubr.f32.gmra.mrb[0].mxu0 %v224
    %v337 = vpop.f32.mrb[0].mxu0
    %v338 = vadd.f32 %v220, %v337
    %v339 = vpop.f32.mrb[0].mxu0
    %340 = vmatprep.mubr.f32.mxu0 0.0
    %341 = vmatmul.mubr.f32.gmra.mrb[0].mxu0 %v227
    %v342 = vpop.f32.mrb[0].mxu0
    %v343 = vadd.f32 %v220, %v342
    %v344 = vpop.f32.mrb[0].mxu0
    %345 = vmatprep.mubr.f32.mxu0 0.0
    %346 = vmatmul.mubr.f32.gmra.mrb[0].mxu0 %v230
    %v347 = vpop.f32.mrb[0].mxu0
    %v348 = vadd.f32 %v220, %v347
    %v349 = vpop.f32.mrb[0].mxu0
    %350 = vmatprep.mubr.f32.mxu0 0.0
    %351 = vmatmul.mubr.f32.gmra.mrb[0].mxu0 %v233
    %v352 = vpop.f32.mrb[0].mxu0
    %v353 = vadd.f32 %v220, %v352
    %v354 = vpop.f32.mrb[0].mxu0
    %355 = vmatprep.mubr.f32.mxu0 0.0
    %356 = vmatmul.mubr.f32.gmra.mrb[0].mxu0 %v236
    %v357 = vpop.f32.mrb[0].mxu0
    %v358 = vadd.f32 %v220, %v357
    %v359 = vpop.f32.mrb[0].mxu0
    %360 = vmatprep.mubr.f32.mxu0 0.0
    %361 = vmatmul.mubr.f32.gmra.mrb[0].mxu0 %v239
    %v362 = vpop.f32.mrb[0].mxu0
    %v363 = vadd.f32 %v220, %v362
    %v364 = vpop.f32.mrb[0].mxu0
    %365 = vmatprep.mubr.f32.mxu0 0.0
    %366 = vmatmul.mubr.f32.gmra.mrb[0].mxu0 %v242
    %v367 = vpop.f32.mrb[0].mxu0
    %v368 = vadd.f32 %v220, %v367
    %v369 = vpop.f32.mrb[0].mxu0
    %370 = vmatprep.mubr.f32.mxu0 0.0
    %371 = vmatmul.mubr.f32.gmra.mrb[0].mxu0 %v245
    %v372 = vpop.f32.mrb[0].mxu0
    %v373 = vadd.f32 %v220, %v372
    %v374 = vpop.f32.mrb[0].mxu0
    %375 = vmatprep.mubr.f32.mxu0 0.0
    %376 = vmatmul.mubr.f32.gmra.mrb[0].mxu0 %v248
    %v377 = vpop.f32.mrb[0].mxu0
    %v378 = vadd.f32 %v220, %v377
    %v379 = vpop.f32.mrb[0].mxu0
    %380 = vmatprep.mubr.f32.mxu0 0.0
    %381 = vmatmul.mubr.f32.gmra.mrb[0].mxu0 %v251
    %v382 = vpop.f32.mrb[0].mxu0
    %v383 = vadd.f32 %v220, %v382
    %v384 = vpop.f32.mrb[0].mxu0
    %385 = vmatprep.mubr.f32.mxu0 0.0
    %386 = vmatmul.mubr.f32.gmra.mrb[0].mxu0 %v254
    %v387 = vpop.f32.mrb[0].mxu0
    %v388 = vadd.f32 %v220, %v387
    %v389 = vpop.f32.mrb[0].mxu0
    %390 = vmatprep.mubr.f32.mxu0 0.0
    %391 = vmatmul.mubr.f32.gmra.mrb[0].mxu0 %v257
    %v392 = vpop.f32.mrb[0].mxu0
    %v393 = vadd.f32 %v220, %v392
    %v394 = vpop.f32.mrb[0].mxu0
    %395 = vmatprep.mubr.f32.mxu0 0.0
    %396 = vmatmul.mubr.f32.gmra.mrb[0].mxu0 %v260
    %v397 = vpop.f32.mrb[0].mxu0
    %v398 = vadd.f32 %v220, %v397
    %v399 = vpop.f32.mrb[0].mxu0
    %400 = vmatprep.mubr.f32.mxu0 0.0
    %401 = vmatmul.mubr.f32.gmra.mrb[0].mxu0 %v263
    %v402 = vpop.f32.mrb[0].mxu0
    %v403 = vadd.f32 %v220, %v402
    %v404 = vpop.f32.mrb[0].mxu0
    %405 = vmatprep.mubr.f32.mxu0 0.0
    %406 = vmatmul.mubr.f32.gmra.mrb[0].mxu0 %v266
    %v407 = vpop.f32.mrb[0].mxu0
    %v408 = vadd.f32 %v220, %v407
    %v409 = vpop.f32.mrb[0].mxu0
    %410 = vmatprep.mubr.f32.mxu0 0.0
    %411 = vmatmul.mubr.f32.gmra.mrb[0].mxu0 %v269
    %v412 = vpop.f32.mrb[0].mxu0
    %v413 = vadd.f32 %v220, %v412
    %v414 = vpop.f32.mrb[0].mxu0
    %415 = vdwg.mxu0
    %v416 = vmax.f32 %v338, 0.0
    %v417 = vmax.f32 %v343, 0.0
    %v418 = vmax.f32 %v348, 0.0
    %v419 = vmax.f32 %v353, 0.0
    %v420 = vmax.f32 %v358, 0.0
    %v421 = vmax.f32 %v363, 0.0
    %v422 = vmax.f32 %v368, 0.0
    %v423 = vmax.f32 %v373, 0.0
    %v424 = vmax.f32 %v378, 0.0
    %v425 = vmax.f32 %v383, 0.0
    %v426 = vmax.f32 %v388, 0.0
    %v427 = vmax.f32 %v393, 0.0
    %v428 = vmax.f32 %v398, 0.0
    %v429 = vmax.f32 %v403, 0.0
    %v430 = vmax.f32 %v408, 0.0
    %v431 = vmax.f32 %v413, 0.0
    %432 = vmatprep.subr.mxu0 0.0
    %433 = vmatpush1.msra.mxu0 %v416
    %434 = vmatprep.subr.mxu0 0.0
    %435 = vmatpush1.msra.mxu0 %v417
    %436 = vmatprep.subr.mxu0 0.0
    %437 = vmatpush1.msra.mxu0 %v418
    %438 = vmatprep.subr.mxu0 0.0
    %439 = vmatpush1.msra.mxu0 %v419
    %440 = vmatprep.subr.mxu0 0.0
    %441 = vmatpush1.msra.mxu0 %v420
    %442 = vmatprep.subr.mxu0 0.0
    %443 = vmatpush1.msra.mxu0 %v421
    %444 = vmatprep.subr.mxu0 0.0
    %445 = vmatpush1.msra.mxu0 %v422
    %446 = vmatprep.subr.mxu0 0.0
    %447 = vmatpush1.msra.mxu0 %v423
    %448 = vmatprep.subr.mxu0 0.0
    %449 = vmatpush1.msra.mxu0 %v424
    %450 = vmatprep.subr.mxu0 0.0
    %451 = vmatpush1.msra.mxu0 %v425
    %452 = vmatprep.subr.mxu0 0.0
    %453 = vmatpush1.msra.mxu0 %v426
    %454 = vmatprep.subr.mxu0 0.0
    %455 = vmatpush1.msra.mxu0 %v427
    %456 = vmatprep.subr.mxu0 0.0
    %457 = vmatpush1.msra.mxu0 %v428
    %458 = vmatprep.subr.mxu0 0.0
    %459 = vmatpush1.msra.mxu0 %v429
    %460 = vmatprep.subr.mxu0 0.0
    %461 = vmatpush1.msra.mxu0 %v430
    %462 = vmatprep.subr.mxu0 0.0
    %463 = vmatpush1.msra.mxu0 %v431
    %464 = vmatprep.subr.mxu0 0.0
    %465 = vmatpush1.msra.mxu0 0.0
    %466 = vmatprep.subr.mxu0 0.0
    %467 = vmatpush1.msra.mxu0 0.0
    %468 = vmatprep.subr.mxu0 0.0
    %469 = vmatpush1.msra.mxu0 0.0
    %470 = vmatprep.subr.mxu0 0.0
    %471 = vmatpush1.msra.mxu0 0.0
    %472 = vmatprep.subr.mxu0 0.0
    %473 = vmatpush1.msra.mxu0 0.0
    %474 = vmatprep.subr.mxu0 0.0
    %475 = vmatpush1.msra.mxu0 0.0
    %476 = vmatprep.subr.mxu0 0.0
    %477 = vmatpush1.msra.mxu0 0.0
    %478 = vmatprep.subr.mxu0 0.0
    %479 = vmatpush1.msra.mxu0 0.0
    %480 = vmatprep.subr.mxu0 0.0
    %481 = vmatpush1.msra.mxu0 0.0
    %482 = vmatprep.subr.mxu0 0.0
    %483 = vmatpush1.msra.mxu0 0.0
    %484 = vmatprep.subr.mxu0 0.0
    %485 = vmatpush1.msra.mxu0 0.0
    %486 = vmatprep.subr.mxu0 0.0
    %487 = vmatpush1.msra.mxu0 0.0
    %488 = vmatprep.subr.mxu0 0.0
    %489 = vmatpush1.msra.mxu0 0.0
    %490 = vmatprep.subr.mxu0 0.0
    %491 = vmatpush1.msra.mxu0 0.0
    %492 = vmatprep.subr.mxu0 0.0
    %493 = vmatpush1.msra.mxu0 0.0
    %494 = vmatprep.subr.mxu0 0.0
    %495 = vmatpush1.msra.mxu0 0.0
    %496 = vmatprep.mubr.f32.mxu0 0.0
    %497 = vmatmul.mubr.f32.gmra.mrb[0].mxu0 %v30
    %v498 = vpop.f32.mrb[0].mxu0
    %v499 = vadd.f32 0.0, %v498
    %v500 = vpop.f32.mrb[0].mxu0
    %501 = vmatprep.mubr.f32.mxu0 0.0
    %502 = vmatmul.mubr.f32.gmra.mrb[0].mxu0 %v31
    %v503 = vpop.f32.mrb[0].mxu0
    %v504 = vadd.f32 0.0, %v503
    %v505 = vpop.f32.mrb[0].mxu0
    %506 = vmatprep.mubr.f32.mxu0 0.0
    %507 = vmatmul.mubr.f32.gmra.mrb[0].mxu0 %v32
    %v508 = vpop.f32.mrb[0].mxu0
    %v509 = vadd.f32 0.0, %v508
    %v510 = vpop.f32.mrb[0].mxu0
    %511 = vmatprep.mubr.f32.mxu0 0.0
    %512 = vmatmul.mubr.f32.gmra.mrb[0].mxu0 %v33
    %v513 = vpop.f32.mrb[0].mxu0
    %v514 = vadd.f32 0.0, %v513
    %v515 = vpop.f32.mrb[0].mxu0
    %516 = vmatprep.mubr.f32.mxu0 0.0
    %517 = vmatmul.mubr.f32.gmra.mrb[0].mxu0 %v34
    %v518 = vpop.f32.mrb[0].mxu0
    %v519 = vadd.f32 0.0, %v518
    %v520 = vpop.f32.mrb[0].mxu0
    %521 = vmatprep.mubr.f32.mxu0 0.0
    %522 = vmatmul.mubr.f32.gmra.mrb[0].mxu0 %v35
    %v523 = vpop.f32.mrb[0].mxu0
    %v524 = vadd.f32 0.0, %v523
    %v525 = vpop.f32.mrb[0].mxu0
    %526 = vmatprep.mubr.f32.mxu0 0.0
    %527 = vmatmul.mubr.f32.gmra.mrb[0].mxu0 %v36
    %v528 = vpop.f32.mrb[0].mxu0
    %v529 = vadd.f32 0.0, %v528
    %v530 = vpop.f32.mrb[0].mxu0
    %531 = vmatprep.mubr.f32.mxu0 0.0
    %532 = vmatmul.mubr.f32.gmra.mrb[0].mxu0 %v37
    %v533 = vpop.f32.mrb[0].mxu0
    %v534 = vadd.f32 0.0, %v533
    %v535 = vpop.f32.mrb[0].mxu0
    %536 = vmatprep.mubr.f32.mxu0 0.0
    %537 = vmatmul.mubr.f32.gmra.mrb[0].mxu0 %v38
    %v538 = vpop.f32.mrb[0].mxu0
    %v539 = vadd.f32 0.0, %v538
    %v540 = vpop.f32.mrb[0].mxu0
    %541 = vmatprep.mubr.f32.mxu0 0.0
    %542 = vmatmul.mubr.f32.gmra.mrb[0].mxu0 %v39
    %v543 = vpop.f32.mrb[0].mxu0
    %v544 = vadd.f32 0.0, %v543
    %v545 = vpop.f32.mrb[0].mxu0
    %546 = vmatprep.mubr.f32.mxu0 0.0
    %547 = vmatmul.mubr.f32.gmra.mrb[0].mxu0 %v40
    %v548 = vpop.f32.mrb[0].mxu0
    %v549 = vadd.f32 0.0, %v548
    %v550 = vpop.f32.mrb[0].mxu0
    %551 = vmatprep.mubr.f32.mxu0 0.0
    %552 = vmatmul.mubr.f32.gmra.mrb[0].mxu0 %v41
    %v553 = vpop.f32.mrb[0].mxu0
    %v554 = vadd.f32 0.0, %v553
    %v555 = vpop.f32.mrb[0].mxu0
    %556 = vmatprep.mubr.f32.mxu0 0.0
    %557 = vmatmul.mubr.f32.gmra.mrb[0].mxu0 %v42
    %v558 = vpop.f32.mrb[0].mxu0
    %v559 = vadd.f32 0.0, %v558
    %v560 = vpop.f32.mrb[0].mxu0
    %561 = vmatprep.mubr.f32.mxu0 0.0
    %562 = vmatmul.mubr.f32.gmra.mrb[0].mxu0 %v43
    %v563 = vpop.f32.mrb[0].mxu0
    %v564 = vadd.f32 0.0, %v563
    %v565 = vpop.f32.mrb[0].mxu0
    %566 = vmatprep.mubr.f32.mxu0 0.0
    %567 = vmatmul.mubr.f32.gmra.mrb[0].mxu0 %v44
    %v568 = vpop.f32.mrb[0].mxu0
    %v569 = vadd.f32 0.0, %v568
    %v570 = vpop.f32.mrb[0].mxu0
    %571 = vmatprep.mubr.f32.mxu0 0.0
    %572 = vmatmul.mubr.f32.gmra.mrb[0].mxu0 %v45
    %v573 = vpop.f32.mrb[0].mxu0
    %v574 = vadd.f32 0.0, %v573
    %v575 = vpop.f32.mrb[0].mxu0
    %576 = vdwg.mxu0
    %v577 = vld [vmem:[%s4] sm:$0xff]
    %v578 = vld [vmem:[%s4 + $0x8] sm:$0xff]
    %v579 = vld [vmem:[%s4 + $0x10] sm:$0xff]
    %v580 = vld [vmem:[%s4 + $0x18] sm:$0xff]
    %v581 = vld [vmem:[%s4 + $0x20] sm:$0xff]
    %v582 = vld [vmem:[%s4 + $0x28] sm:$0xff]
    %v583 = vld [vmem:[%s4 + $0x30] sm:$0xff]
    %v584 = vld [vmem:[%s4 + $0x38] sm:$0xff]
    %v585 = vld [vmem:[%s5] sm:$0x1]
    %v587 = vlaneseq
    %v588 = vshrl.u32 %v587, 7
    %v589 = vsub.s32 0, %v588
    %v590 = vrot.slane %v585, %v589
    %v593 = vsel %vm222, %v499, 0
    %v596 = vsel %vm222, %v504, 0
    %v599 = vsel %vm222, %v509, 0
    %v602 = vsel %vm222, %v514, 0
    %v605 = vsel %vm222, %v519, 0
    %v608 = vsel %vm222, %v524, 0
    %v611 = vsel %vm222, %v529, 0
    %v614 = vsel %vm222, %v534, 0
    %v617 = vsel %vm222, %v539, 0
    %v620 = vsel %vm222, %v544, 0
    %v623 = vsel %vm222, %v549, 0
    %v626 = vsel %vm222, %v554, 0
    %v629 = vsel %vm222, %v559, 0
    %v632 = vsel %vm222, %v564, 0
    %v635 = vsel %vm222, %v569, 0
    %v638 = vsel %vm222, %v574, 0
    %640 = vmatprep.subr.mxu0 0.0
    %641 = vmatpush1.msra.mxu0 %v577
    %642 = vmatprep.subr.mxu0 0.0
    %643 = vmatpush1.msra.mxu0 %v578
    %644 = vmatprep.subr.mxu0 0.0
    %645 = vmatpush1.msra.mxu0 %v579
    %646 = vmatprep.subr.mxu0 0.0
    %647 = vmatpush1.msra.mxu0 %v580
    %648 = vmatprep.subr.mxu0 0.0
    %649 = vmatpush1.msra.mxu0 %v581
    %650 = vmatprep.subr.mxu0 0.0
    %651 = vmatpush1.msra.mxu0 %v582
    %652 = vmatprep.subr.mxu0 0.0
    %653 = vmatpush1.msra.mxu0 %v583
    %654 = vmatprep.subr.mxu0 0.0
    %655 = vmatpush1.msra.mxu0 %v584
    %656 = vmatprep.subr.mxu0 0.0
    %657 = vmatpush1.msra.mxu0 0.0
    %658 = vmatprep.subr.mxu0 0.0
    %659 = vmatpush1.msra.mxu0 0.0
    %660 = vmatprep.subr.mxu0 0.0
    %661 = vmatpush1.msra.mxu0 0.0
    %662 = vmatprep.subr.mxu0 0.0
    %663 = vmatpush1.msra.mxu0 0.0
    %664 = vmatprep.subr.mxu0 0.0
    %665 = vmatpush1.msra.mxu0 0.0
    %666 = vmatprep.subr.mxu0 0.0
    %667 = vmatpush1.msra.mxu0 0.0
    %668 = vmatprep.subr.mxu0 0.0
    %669 = vmatpush1.msra.mxu0 0.0
    %670 = vmatprep.subr.mxu0 0.0
    %671 = vmatpush1.msra.mxu0 0.0
    %672 = vmatprep.subr.mxu0 0.0
    %673 = vmatpush1.msra.mxu0 0.0
    %674 = vmatprep.subr.mxu0 0.0
    %675 = vmatpush1.msra.mxu0 0.0
    %676 = vmatprep.subr.mxu0 0.0
    %677 = vmatpush1.msra.mxu0 0.0
    %678 = vmatprep.subr.mxu0 0.0
    %679 = vmatpush1.msra.mxu0 0.0
    %680 = vmatprep.subr.mxu0 0.0
    %681 = vmatpush1.msra.mxu0 0.0
    %682 = vmatprep.subr.mxu0 0.0
    %683 = vmatpush1.msra.mxu0 0.0
    %684 = vmatprep.subr.mxu0 0.0
    %685 = vmatpush1.msra.mxu0 0.0
    %686 = vmatprep.subr.mxu0 0.0
    %687 = vmatpush1.msra.mxu0 0.0
    %688 = vmatprep.subr.mxu0 0.0
    %689 = vmatpush1.msra.mxu0 0.0
    %690 = vmatprep.subr.mxu0 0.0
    %691 = vmatpush1.msra.mxu0 0.0
    %692 = vmatprep.subr.mxu0 0.0
    %693 = vmatpush1.msra.mxu0 0.0
    %694 = vmatprep.subr.mxu0 0.0
    %695 = vmatpush1.msra.mxu0 0.0
    %696 = vmatprep.subr.mxu0 0.0
    %697 = vmatpush1.msra.mxu0 0.0
    %698 = vmatprep.subr.mxu0 0.0
    %699 = vmatpush1.msra.mxu0 0.0
    %700 = vmatprep.subr.mxu0 0.0
    %701 = vmatpush1.msra.mxu0 0.0
    %702 = vmatprep.subr.mxu0 0.0
    %703 = vmatpush1.msra.mxu0 0.0
    %704 = vmatprep.mubr.f32.mxu0 0.0
    %705 = vmatmul.mubr.f32.gmra.mrb[0].mxu0 %v593
    %v706 = vpop.f32.mrb[0].mxu0
    %v707 = vadd.f32 %v590, %v706
    %v708 = vpop.f32.mrb[0].mxu0
    %709 = vmatprep.mubr.f32.mxu0 0.0
    %710 = vmatmul.mubr.f32.gmra.mrb[0].mxu0 %v596
    %v711 = vpop.f32.mrb[0].mxu0
    %v712 = vadd.f32 %v590, %v711
    %v713 = vpop.f32.mrb[0].mxu0
    %714 = vmatprep.mubr.f32.mxu0 0.0
    %715 = vmatmul.mubr.f32.gmra.mrb[0].mxu0 %v599
    %v716 = vpop.f32.mrb[0].mxu0
    %v717 = vadd.f32 %v590, %v716
    %v718 = vpop.f32.mrb[0].mxu0
    %719 = vmatprep.mubr.f32.mxu0 0.0
    %720 = vmatmul.mubr.f32.gmra.mrb[0].mxu0 %v602
    %v721 = vpop.f32.mrb[0].mxu0
    %v722 = vadd.f32 %v590, %v721
    %v723 = vpop.f32.mrb[0].mxu0
    %724 = vmatprep.mubr.f32.mxu0 0.0
    %725 = vmatmul.mubr.f32.gmra.mrb[0].mxu0 %v605
    %v726 = vpop.f32.mrb[0].mxu0
    %v727 = vadd.f32 %v590, %v726
    %v728 = vpop.f32.mrb[0].mxu0
    %729 = vmatprep.mubr.f32.mxu0 0.0
    %730 = vmatmul.mubr.f32.gmra.mrb[0].mxu0 %v608
    %v731 = vpop.f32.mrb[0].mxu0
    %v732 = vadd.f32 %v590, %v731
    %v733 = vpop.f32.mrb[0].mxu0
    %734 = vmatprep.mubr.f32.mxu0 0.0
    %735 = vmatmul.mubr.f32.gmra.mrb[0].mxu0 %v611
    %v736 = vpop.f32.mrb[0].mxu0
    %v737 = vadd.f32 %v590, %v736
    %v738 = vpop.f32.mrb[0].mxu0
    %739 = vmatprep.mubr.f32.mxu0 0.0
    %740 = vmatmul.mubr.f32.gmra.mrb[0].mxu0 %v614
    %v741 = vpop.f32.mrb[0].mxu0
    %v742 = vadd.f32 %v590, %v741
    %v743 = vpop.f32.mrb[0].mxu0
    %744 = vmatprep.mubr.f32.mxu0 0.0
    %745 = vmatmul.mubr.f32.gmra.mrb[0].mxu0 %v617
    %v746 = vpop.f32.mrb[0].mxu0
    %v747 = vadd.f32 %v590, %v746
    %v748 = vpop.f32.mrb[0].mxu0
    %749 = vmatprep.mubr.f32.mxu0 0.0
    %750 = vmatmul.mubr.f32.gmra.mrb[0].mxu0 %v620
    %v751 = vpop.f32.mrb[0].mxu0
    %v752 = vadd.f32 %v590, %v751
    %v753 = vpop.f32.mrb[0].mxu0
    %754 = vmatprep.mubr.f32.mxu0 0.0
    %755 = vmatmul.mubr.f32.gmra.mrb[0].mxu0 %v623
    %v756 = vpop.f32.mrb[0].mxu0
    %v757 = vadd.f32 %v590, %v756
    %v758 = vpop.f32.mrb[0].mxu0
    %759 = vmatprep.mubr.f32.mxu0 0.0
    %760 = vmatmul.mubr.f32.gmra.mrb[0].mxu0 %v626
    %v761 = vpop.f32.mrb[0].mxu0
    %v762 = vadd.f32 %v590, %v761
    %v763 = vpop.f32.mrb[0].mxu0
    %764 = vmatprep.mubr.f32.mxu0 0.0
    %765 = vmatmul.mubr.f32.gmra.mrb[0].mxu0 %v629
    %v766 = vpop.f32.mrb[0].mxu0
    %v767 = vadd.f32 %v590, %v766
    %v768 = vpop.f32.mrb[0].mxu0
    %769 = vmatprep.mubr.f32.mxu0 0.0
    %770 = vmatmul.mubr.f32.gmra.mrb[0].mxu0 %v632
    %v771 = vpop.f32.mrb[0].mxu0
    %v772 = vadd.f32 %v590, %v771
    %v773 = vpop.f32.mrb[0].mxu0
    %774 = vmatprep.mubr.f32.mxu0 0.0
    %775 = vmatmul.mubr.f32.gmra.mrb[0].mxu0 %v635
    %v776 = vpop.f32.mrb[0].mxu0
    %v777 = vadd.f32 %v590, %v776
    %v778 = vpop.f32.mrb[0].mxu0
    %779 = vmatprep.mubr.f32.mxu0 0.0
    %780 = vmatmul.mubr.f32.gmra.mrb[0].mxu0 %v638
    %v781 = vpop.f32.mrb[0].mxu0
    %v782 = vadd.f32 %v590, %v781
    %v783 = vpop.f32.mrb[0].mxu0
    %784 = vdwg.mxu0
    %v785 = vmax.f32 %v707, 0.0
    %v786 = vmax.f32 %v712, 0.0
    %v787 = vmax.f32 %v717, 0.0
    %v788 = vmax.f32 %v722, 0.0
    %v789 = vmax.f32 %v727, 0.0
    %v790 = vmax.f32 %v732, 0.0
    %v791 = vmax.f32 %v737, 0.0
    %v792 = vmax.f32 %v742, 0.0
    %v793 = vmax.f32 %v747, 0.0
    %v794 = vmax.f32 %v752, 0.0
    %v795 = vmax.f32 %v757, 0.0
    %v796 = vmax.f32 %v762, 0.0
    %v797 = vmax.f32 %v767, 0.0
    %v798 = vmax.f32 %v772, 0.0
    %v799 = vmax.f32 %v777, 0.0
    %v800 = vmax.f32 %v782, 0.0
    %801 = vmatprep.subr.mxu0 0.0
    %802 = vmatpush1.msra.mxu0 %v785
    %803 = vmatprep.subr.mxu0 0.0
    %804 = vmatpush1.msra.mxu0 %v786
    %805 = vmatprep.subr.mxu0 0.0
    %806 = vmatpush1.msra.mxu0 %v787
    %807 = vmatprep.subr.mxu0 0.0
    %808 = vmatpush1.msra.mxu0 %v788
    %809 = vmatprep.subr.mxu0 0.0
    %810 = vmatpush1.msra.mxu0 %v789
    %811 = vmatprep.subr.mxu0 0.0
    %812 = vmatpush1.msra.mxu0 %v790
    %813 = vmatprep.subr.mxu0 0.0
    %814 = vmatpush1.msra.mxu0 %v791
    %815 = vmatprep.subr.mxu0 0.0
    %816 = vmatpush1.msra.mxu0 %v792
    %817 = vmatprep.subr.mxu0 0.0
    %818 = vmatpush1.msra.mxu0 %v793
    %819 = vmatprep.subr.mxu0 0.0
    %820 = vmatpush1.msra.mxu0 %v794
    %821 = vmatprep.subr.mxu0 0.0
    %822 = vmatpush1.msra.mxu0 %v795
    %823 = vmatprep.subr.mxu0 0.0
    %824 = vmatpush1.msra.mxu0 %v796
    %825 = vmatprep.subr.mxu0 0.0
    %826 = vmatpush1.msra.mxu0 %v797
    %827 = vmatprep.subr.mxu0 0.0
    %828 = vmatpush1.msra.mxu0 %v798
    %829 = vmatprep.subr.mxu0 0.0
    %830 = vmatpush1.msra.mxu0 %v799
    %831 = vmatprep.subr.mxu0 0.0
    %832 = vmatpush1.msra.mxu0 %v800
    %833 = vmatprep.subr.mxu0 0.0
    %834 = vmatpush1.msra.mxu0 0.0
    %835 = vmatprep.subr.mxu0 0.0
    %836 = vmatpush1.msra.mxu0 0.0
    %837 = vmatprep.subr.mxu0 0.0
    %838 = vmatpush1.msra.mxu0 0.0
    %839 = vmatprep.subr.mxu0 0.0
    %840 = vmatpush1.msra.mxu0 0.0
    %841 = vmatprep.subr.mxu0 0.0
    %842 = vmatpush1.msra.mxu0 0.0
    %843 = vmatprep.subr.mxu0 0.0
    %844 = vmatpush1.msra.mxu0 0.0
    %845 = vmatprep.subr.mxu0 0.0
    %846 = vmatpush1.msra.mxu0 0.0
    %847 = vmatprep.subr.mxu0 0.0
    %848 = vmatpush1.msra.mxu0 0.0
    %849 = vmatprep.subr.mxu0 0.0
    %850 = vmatpush1.msra.mxu0 0.0
    %851 = vmatprep.subr.mxu0 0.0
    %852 = vmatpush1.msra.mxu0 0.0
    %853 = vmatprep.subr.mxu0 0.0
    %854 = vmatpush1.msra.mxu0 0.0
    %855 = vmatprep.subr.mxu0 0.0
    %856 = vmatpush1.msra.mxu0 0.0
    %857 = vmatprep.subr.mxu0 0.0
    %858 = vmatpush1.msra.mxu0 0.0
    %859 = vmatprep.subr.mxu0 0.0
    %860 = vmatpush1.msra.mxu0 0.0
    %861 = vmatprep.subr.mxu0 0.0
    %862 = vmatpush1.msra.mxu0 0.0
    %863 = vmatprep.subr.mxu0 0.0
    %864 = vmatpush1.msra.mxu0 0.0
    %865 = vmatprep.mubr.f32.mxu0 0.0
    %866 = vmatmul.mubr.f32.gmra.mrb[0].mxu0 %v30
    %v867 = vpop.f32.mrb[0].mxu0
    %v868 = vadd.f32 0.0, %v867
    %v869 = vpop.f32.mrb[0].mxu0
    %870 = vmatprep.mubr.f32.mxu0 0.0
    %871 = vmatmul.mubr.f32.gmra.mrb[0].mxu0 %v31
    %v872 = vpop.f32.mrb[0].mxu0
    %v873 = vadd.f32 0.0, %v872
    %v874 = vpop.f32.mrb[0].mxu0
    %875 = vmatprep.mubr.f32.mxu0 0.0
    %876 = vmatmul.mubr.f32.gmra.mrb[0].mxu0 %v32
    %v877 = vpop.f32.mrb[0].mxu0
    %v878 = vadd.f32 0.0, %v877
    %v879 = vpop.f32.mrb[0].mxu0
    %880 = vmatprep.mubr.f32.mxu0 0.0
    %881 = vmatmul.mubr.f32.gmra.mrb[0].mxu0 %v33
    %v882 = vpop.f32.mrb[0].mxu0
    %v883 = vadd.f32 0.0, %v882
    %v884 = vpop.f32.mrb[0].mxu0
    %885 = vmatprep.mubr.f32.mxu0 0.0
    %886 = vmatmul.mubr.f32.gmra.mrb[0].mxu0 %v34
    %v887 = vpop.f32.mrb[0].mxu0
    %v888 = vadd.f32 0.0, %v887
    %v889 = vpop.f32.mrb[0].mxu0
    %890 = vmatprep.mubr.f32.mxu0 0.0
    %891 = vmatmul.mubr.f32.gmra.mrb[0].mxu0 %v35
    %v892 = vpop.f32.mrb[0].mxu0
    %v893 = vadd.f32 0.0, %v892
    %v894 = vpop.f32.mrb[0].mxu0
    %895 = vmatprep.mubr.f32.mxu0 0.0
    %896 = vmatmul.mubr.f32.gmra.mrb[0].mxu0 %v36
    %v897 = vpop.f32.mrb[0].mxu0
    %v898 = vadd.f32 0.0, %v897
    %v899 = vpop.f32.mrb[0].mxu0
    %900 = vmatprep.mubr.f32.mxu0 0.0
    %901 = vmatmul.mubr.f32.gmra.mrb[0].mxu0 %v37
    %v902 = vpop.f32.mrb[0].mxu0
    %v903 = vadd.f32 0.0, %v902
    %v904 = vpop.f32.mrb[0].mxu0
    %905 = vmatprep.mubr.f32.mxu0 0.0
    %906 = vmatmul.mubr.f32.gmra.mrb[0].mxu0 %v38
    %v907 = vpop.f32.mrb[0].mxu0
    %v908 = vadd.f32 0.0, %v907
    %v909 = vpop.f32.mrb[0].mxu0
    %910 = vmatprep.mubr.f32.mxu0 0.0
    %911 = vmatmul.mubr.f32.gmra.mrb[0].mxu0 %v39
    %v912 = vpop.f32.mrb[0].mxu0
    %v913 = vadd.f32 0.0, %v912
    %v914 = vpop.f32.mrb[0].mxu0
    %915 = vmatprep.mubr.f32.mxu0 0.0
    %916 = vmatmul.mubr.f32.gmra.mrb[0].mxu0 %v40
    %v917 = vpop.f32.mrb[0].mxu0
    %v918 = vadd.f32 0.0, %v917
    %v919 = vpop.f32.mrb[0].mxu0
    %920 = vmatprep.mubr.f32.mxu0 0.0
    %921 = vmatmul.mubr.f32.gmra.mrb[0].mxu0 %v41
    %v922 = vpop.f32.mrb[0].mxu0
    %v923 = vadd.f32 0.0, %v922
    %v924 = vpop.f32.mrb[0].mxu0
    %925 = vmatprep.mubr.f32.mxu0 0.0
    %926 = vmatmul.mubr.f32.gmra.mrb[0].mxu0 %v42
    %v927 = vpop.f32.mrb[0].mxu0
    %v928 = vadd.f32 0.0, %v927
    %v929 = vpop.f32.mrb[0].mxu0
    %930 = vmatprep.mubr.f32.mxu0 0.0
    %931 = vmatmul.mubr.f32.gmra.mrb[0].mxu0 %v43
    %v932 = vpop.f32.mrb[0].mxu0
    %v933 = vadd.f32 0.0, %v932
    %v934 = vpop.f32.mrb[0].mxu0
    %935 = vmatprep.mubr.f32.mxu0 0.0
    %936 = vmatmul.mubr.f32.gmra.mrb[0].mxu0 %v44
    %v937 = vpop.f32.mrb[0].mxu0
    %v938 = vadd.f32 0.0, %v937
    %v939 = vpop.f32.mrb[0].mxu0
    %940 = vmatprep.mubr.f32.mxu0 0.0
    %941 = vmatmul.mubr.f32.gmra.mrb[0].mxu0 %v45
    %v942 = vpop.f32.mrb[0].mxu0
    %v943 = vadd.f32 0.0, %v942
    %v944 = vpop.f32.mrb[0].mxu0
    %945 = vdwg.mxu0
    %v946 = vld [vmem:[%s6] sm:$0xff]
    %v947 = vld [vmem:[%s6 + $0x8] sm:$0xff]
    %v948 = vld [vmem:[%s6 + $0x10] sm:$0xff]
    %v949 = vld [vmem:[%s6 + $0x18] sm:$0xff]
    %v950 = vld [vmem:[%s6 + $0x20] sm:$0xff]
    %v951 = vld [vmem:[%s6 + $0x28] sm:$0xff]
    %v952 = vld [vmem:[%s6 + $0x30] sm:$0xff]
    %v953 = vld [vmem:[%s6 + $0x38] sm:$0xff]
    %v954 = vld [vmem:[%s7] sm:$0x1]
    %v956 = vlaneseq
    %v957 = vshrl.u32 %v956, 7
    %v958 = vsub.s32 0, %v957
    %v959 = vrot.slane %v954, %v958
    %v962 = vsel %vm222, %v868, 0
    %v965 = vsel %vm222, %v873, 0
    %v968 = vsel %vm222, %v878, 0
    %v971 = vsel %vm222, %v883, 0
    %v974 = vsel %vm222, %v888, 0
    %v977 = vsel %vm222, %v893, 0
    %v980 = vsel %vm222, %v898, 0
    %v983 = vsel %vm222, %v903, 0
    %v986 = vsel %vm222, %v908, 0
    %v989 = vsel %vm222, %v913, 0
    %v992 = vsel %vm222, %v918, 0
    %v995 = vsel %vm222, %v923, 0
    %v998 = vsel %vm222, %v928, 0
    %v1001 = vsel %vm222, %v933, 0
    %v1004 = vsel %vm222, %v938, 0
    %v1007 = vsel %vm222, %v943, 0
    %1009 = vmatprep.subr.mxu0 0.0
    %1010 = vmatpush1.msra.mxu0 %v946
    %1011 = vmatprep.subr.mxu0 0.0
    %1012 = vmatpush1.msra.mxu0 %v947
    %1013 = vmatprep.subr.mxu0 0.0
    %1014 = vmatpush1.msra.mxu0 %v948
    %1015 = vmatprep.subr.mxu0 0.0
    %1016 = vmatpush1.msra.mxu0 %v949
    %1017 = vmatprep.subr.mxu0 0.0
    %1018 = vmatpush1.msra.mxu0 %v950
    %1019 = vmatprep.subr.mxu0 0.0
    %1020 = vmatpush1.msra.mxu0 %v951
    %1021 = vmatprep.subr.mxu0 0.0
    %1022 = vmatpush1.msra.mxu0 %v952
    %1023 = vmatprep.subr.mxu0 0.0
    %1024 = vmatpush1.msra.mxu0 %v953
    %1025 = vmatprep.subr.mxu0 0.0
    %1026 = vmatpush1.msra.mxu0 0.0
    %1027 = vmatprep.subr.mxu0 0.0
    %1028 = vmatpush1.msra.mxu0 0.0
    %1029 = vmatprep.subr.mxu0 0.0
    %1030 = vmatpush1.msra.mxu0 0.0
    %1031 = vmatprep.subr.mxu0 0.0
    %1032 = vmatpush1.msra.mxu0 0.0
    %1033 = vmatprep.subr.mxu0 0.0
    %1034 = vmatpush1.msra.mxu0 0.0
    %1035 = vmatprep.subr.mxu0 0.0
    %1036 = vmatpush1.msra.mxu0 0.0
    %1037 = vmatprep.subr.mxu0 0.0
    %1038 = vmatpush1.msra.mxu0 0.0
    %1039 = vmatprep.subr.mxu0 0.0
    %1040 = vmatpush1.msra.mxu0 0.0
    %1041 = vmatprep.subr.mxu0 0.0
    %1042 = vmatpush1.msra.mxu0 0.0
    %1043 = vmatprep.subr.mxu0 0.0
    %1044 = vmatpush1.msra.mxu0 0.0
    %1045 = vmatprep.subr.mxu0 0.0
    %1046 = vmatpush1.msra.mxu0 0.0
    %1047 = vmatprep.subr.mxu0 0.0
    %1048 = vmatpush1.msra.mxu0 0.0
    %1049 = vmatprep.subr.mxu0 0.0
    %1050 = vmatpush1.msra.mxu0 0.0
    %1051 = vmatprep.subr.mxu0 0.0
    %1052 = vmatpush1.msra.mxu0 0.0
    %1053 = vmatprep.subr.mxu0 0.0
    %1054 = vmatpush1.msra.mxu0 0.0
    %1055 = vmatprep.subr.mxu0 0.0
    %1056 = vmatpush1.msra.mxu0 0.0
    %1057 = vmatprep.subr.mxu0 0.0
    %1058 = vmatpush1.msra.mxu0 0.0
    %1059 = vmatprep.subr.mxu0 0.0
    %1060 = vmatpush1.msra.mxu0 0.0
    %1061 = vmatprep.subr.mxu0 0.0
    %1062 = vmatpush1.msra.mxu0 0.0
    %1063 = vmatprep.subr.mxu0 0.0
    %1064 = vmatpush1.msra.mxu0 0.0
    %1065 = vmatprep.subr.mxu0 0.0
    %1066 = vmatpush1.msra.mxu0 0.0
    %1067 = vmatprep.subr.mxu0 0.0
    %1068 = vmatpush1.msra.mxu0 0.0
    %1069 = vmatprep.subr.mxu0 0.0
    %1070 = vmatpush1.msra.mxu0 0.0
    %1071 = vmatprep.subr.mxu0 0.0
    %1072 = vmatpush1.msra.mxu0 0.0
    %1073 = vmatprep.mubr.f32.mxu0 0.0
    %1074 = vmatmul.mubr.f32.gmra.mrb[0].mxu0 %v962
    %v1075 = vpop.f32.mrb[0].mxu0
    %v1076 = vadd.f32 %v959, %v1075
    %v1077 = vpop.f32.mrb[0].mxu0
    %1078 = vmatprep.mubr.f32.mxu0 0.0
    %1079 = vmatmul.mubr.f32.gmra.mrb[0].mxu0 %v965
    %v1080 = vpop.f32.mrb[0].mxu0
    %v1081 = vadd.f32 %v959, %v1080
    %v1082 = vpop.f32.mrb[0].mxu0
    %1083 = vmatprep.mubr.f32.mxu0 0.0
    %1084 = vmatmul.mubr.f32.gmra.mrb[0].mxu0 %v968
    %v1085 = vpop.f32.mrb[0].mxu0
    %v1086 = vadd.f32 %v959, %v1085
    %v1087 = vpop.f32.mrb[0].mxu0
    %1088 = vmatprep.mubr.f32.mxu0 0.0
    %1089 = vmatmul.mubr.f32.gmra.mrb[0].mxu0 %v971
    %v1090 = vpop.f32.mrb[0].mxu0
    %v1091 = vadd.f32 %v959, %v1090
    %v1092 = vpop.f32.mrb[0].mxu0
    %1093 = vmatprep.mubr.f32.mxu0 0.0
    %1094 = vmatmul.mubr.f32.gmra.mrb[0].mxu0 %v974
    %v1095 = vpop.f32.mrb[0].mxu0
    %v1096 = vadd.f32 %v959, %v1095
    %v1097 = vpop.f32.mrb[0].mxu0
    %1098 = vmatprep.mubr.f32.mxu0 0.0
    %1099 = vmatmul.mubr.f32.gmra.mrb[0].mxu0 %v977
    %v1100 = vpop.f32.mrb[0].mxu0
    %v1101 = vadd.f32 %v959, %v1100
    %v1102 = vpop.f32.mrb[0].mxu0
    %1103 = vmatprep.mubr.f32.mxu0 0.0
    %1104 = vmatmul.mubr.f32.gmra.mrb[0].mxu0 %v980
    %v1105 = vpop.f32.mrb[0].mxu0
    %v1106 = vadd.f32 %v959, %v1105
    %v1107 = vpop.f32.mrb[0].mxu0
    %1108 = vmatprep.mubr.f32.mxu0 0.0
    %1109 = vmatmul.mubr.f32.gmra.mrb[0].mxu0 %v983
    %v1110 = vpop.f32.mrb[0].mxu0
    %v1111 = vadd.f32 %v959, %v1110
    %v1112 = vpop.f32.mrb[0].mxu0
    %1113 = vmatprep.mubr.f32.mxu0 0.0
    %1114 = vmatmul.mubr.f32.gmra.mrb[0].mxu0 %v986
    %v1115 = vpop.f32.mrb[0].mxu0
    %v1116 = vadd.f32 %v959, %v1115
    %v1117 = vpop.f32.mrb[0].mxu0
    %1118 = vmatprep.mubr.f32.mxu0 0.0
    %1119 = vmatmul.mubr.f32.gmra.mrb[0].mxu0 %v989
    %v1120 = vpop.f32.mrb[0].mxu0
    %v1121 = vadd.f32 %v959, %v1120
    %v1122 = vpop.f32.mrb[0].mxu0
    %1123 = vmatprep.mubr.f32.mxu0 0.0
    %1124 = vmatmul.mubr.f32.gmra.mrb[0].mxu0 %v992
    %v1125 = vpop.f32.mrb[0].mxu0
    %v1126 = vadd.f32 %v959, %v1125
    %v1127 = vpop.f32.mrb[0].mxu0
    %1128 = vmatprep.mubr.f32.mxu0 0.0
    %1129 = vmatmul.mubr.f32.gmra.mrb[0].mxu0 %v995
    %v1130 = vpop.f32.mrb[0].mxu0
    %v1131 = vadd.f32 %v959, %v1130
    %v1132 = vpop.f32.mrb[0].mxu0
    %1133 = vmatprep.mubr.f32.mxu0 0.0
    %1134 = vmatmul.mubr.f32.gmra.mrb[0].mxu0 %v998
    %v1135 = vpop.f32.mrb[0].mxu0
    %v1136 = vadd.f32 %v959, %v1135
    %v1137 = vpop.f32.mrb[0].mxu0
    %1138 = vmatprep.mubr.f32.mxu0 0.0
    %1139 = vmatmul.mubr.f32.gmra.mrb[0].mxu0 %v1001
    %v1140 = vpop.f32.mrb[0].mxu0
    %v1141 = vadd.f32 %v959, %v1140
    %v1142 = vpop.f32.mrb[0].mxu0
    %1143 = vmatprep.mubr.f32.mxu0 0.0
    %1144 = vmatmul.mubr.f32.gmra.mrb[0].mxu0 %v1004
    %v1145 = vpop.f32.mrb[0].mxu0
    %v1146 = vadd.f32 %v959, %v1145
    %v1147 = vpop.f32.mrb[0].mxu0
    %1148 = vmatprep.mubr.f32.mxu0 0.0
    %1149 = vmatmul.mubr.f32.gmra.mrb[0].mxu0 %v1007
    %v1150 = vpop.f32.mrb[0].mxu0
    %v1151 = vadd.f32 %v959, %v1150
    %v1152 = vpop.f32.mrb[0].mxu0
    %1153 = vdwg.mxu0
    %v1154 = vmax.f32 %v1076, 0.0
    %v1155 = vmax.f32 %v1081, 0.0
    %v1156 = vmax.f32 %v1086, 0.0
    %v1157 = vmax.f32 %v1091, 0.0
    %v1158 = vmax.f32 %v1096, 0.0
    %v1159 = vmax.f32 %v1101, 0.0
    %v1160 = vmax.f32 %v1106, 0.0
    %v1161 = vmax.f32 %v1111, 0.0
    %v1162 = vmax.f32 %v1116, 0.0
    %v1163 = vmax.f32 %v1121, 0.0
    %v1164 = vmax.f32 %v1126, 0.0
    %v1165 = vmax.f32 %v1131, 0.0
    %v1166 = vmax.f32 %v1136, 0.0
    %v1167 = vmax.f32 %v1141, 0.0
    %v1168 = vmax.f32 %v1146, 0.0
    %v1169 = vmax.f32 %v1151, 0.0
    %1170 = vst.msk [vmem:[#allocation2] sm:$0xff] %vm222, %v1154
    %1171 = vst.msk [vmem:[#allocation2 + $0x8] sm:$0xff] %vm222, %v1155
    %1172 = vst.msk [vmem:[#allocation2 + $0x10] sm:$0xff] %vm222, %v1156
    %1173 = vst.msk [vmem:[#allocation2 + $0x18] sm:$0xff] %vm222, %v1157
    %1174 = vst.msk [vmem:[#allocation2 + $0x20] sm:$0xff] %vm222, %v1158
    %1175 = vst.msk [vmem:[#allocation2 + $0x28] sm:$0xff] %vm222, %v1159
    %1176 = vst.msk [vmem:[#allocation2 + $0x30] sm:$0xff] %vm222, %v1160
    %1177 = vst.msk [vmem:[#allocation2 + $0x38] sm:$0xff] %vm222, %v1161
    %1178 = vst.msk [vmem:[#allocation2 + $0x40] sm:$0xff] %vm222, %v1162
    %1179 = vst.msk [vmem:[#allocation2 + $0x48] sm:$0xff] %vm222, %v1163
    %1180 = vst.msk [vmem:[#allocation2 + $0x50] sm:$0xff] %vm222, %v1164
    %1181 = vst.msk [vmem:[#allocation2 + $0x58] sm:$0xff] %vm222, %v1165
    %1182 = vst.msk [vmem:[#allocation2 + $0x60] sm:$0xff] %vm222, %v1166
    %1183 = vst.msk [vmem:[#allocation2 + $0x68] sm:$0xff] %vm222, %v1167
    %1184 = vst.msk [vmem:[#allocation2 + $0x70] sm:$0xff] %vm222, %v1168
    %1185 = vst.msk [vmem:[#allocation2 + $0x78] sm:$0xff] %vm222, %v1169
    // Predicated region
    $region34: #{gcn_forward.1} parent=1 // pred_check
      _
    $region35: #{gcn_forward.1} parent=1 // pred_check_branch
      %1187 = sbr.rel (0) target = $region37
    $region36: #{gcn_forward.1} parent=1 // pred_region
      %s1189 = ssub.s32 2048, 2048
      %1190 = vsyncadd [#allocation3], %s1189
      %s1191 = sshll.u32 [#allocation2], 4
      %s1192 = int_to_ptr.vmem [resolvable:$true] %s1191
      %1197 = dma.vmem_to_hbm [thread:$0]  %s1192, 2048, %s8, [#allocation3], 128, 128, 8
    $region37: #{gcn_forward.1} parent=1 // pred_fallthru
      _
    // Predicated region
    $region38: #{gcn_forward.1} parent=1 // pred_check
      _
    $region39: #{gcn_forward.1} parent=1 // pred_check_branch
      %1199 = sbr.rel (0) target = $region41
    $region40: #{gcn_forward.1} parent=1 // pred_region
      %1200 = dma.done [#allocation3], 2048
    $region41: #{gcn_forward.1} parent=1 // pred_fallthru
      _
    %1201 = vsyncpa [#allocation3], 1

</llo_original>
